<compile_context>
chip_gen: v5e
topology: v5e:2x2
jax: 0.10.0
libtpu: 0.0.40
codegen_flags: <defaults>
</compile_context>

<pallas_src>
import jax
import jax.numpy as jnp
from jax.experimental import pallas as pl
from jax.experimental.pallas import tpu as pltpu


_SMALL_COPY_BYTES = 256 << 10   # below this, launch/fill overhead > copy cost
_MIN_CHUNK_BYTES = 512 << 10    # keep per-DMA descriptor overhead negligible
_TARGET_CHUNKS = 8              # concurrent DMAs to help saturate HBM (v6e/v7x)


def _make_hbm_copy_kernel(chunk_bounds):
    """Build a grid-less kernel doing a chunked, direct HBM->HBM DMA copy.

    chunk_bounds: tuple of static (start, size) slices along axis 0.  Empty
    tuple means "copy the whole ref with one DMA".
    """
    n_sems = max(1, len(chunk_bounds))

    def kernel(x_hbm, o_hbm, sem):
        copies = []
        if not chunk_bounds:
            copies.append(pltpu.make_async_copy(x_hbm, o_hbm, sem.at[0]))
        else:
            for c, (start, size) in enumerate(chunk_bounds):
                copies.append(pltpu.make_async_copy(
                    x_hbm.at[pl.ds(start, size)],
                    o_hbm.at[pl.ds(start, size)],
                    sem.at[c]))
        # Start every chunk first so all DMAs are in flight concurrently
        # (hits the pure read+write HBM roofline), then wait for completion.
        for cp in copies:
            cp.start()
        for cp in copies:
            cp.wait()

    return kernel, n_sems


def pallas_identity_copy(x, *, force_kernel: bool = False):
    """Materialized identity copy of `x` via a chunked HBM->HBM DMA kernel."""
    x = jnp.asarray(x)
    if x.size == 0 or x.ndim == 0:
        return x

    nbytes = x.size * x.dtype.itemsize
    if nbytes < _SMALL_COPY_BYTES and not force_kernel:
        # Small-input fast path: the fixed kernel overhead exceeds the copy.
        return x

    leading = x.shape[0]
    max_chunks_by_size = max(1, nbytes // _MIN_CHUNK_BYTES)
    n_chunks = int(max(1, min(_TARGET_CHUNKS, leading, max_chunks_by_size)))

    if n_chunks == 1:
        chunk_bounds = ()
    else:
        rows = -(-leading // n_chunks)          # cdiv
        chunk_bounds, start = [], 0
        while start < leading:
            size = min(rows, leading - start)
            chunk_bounds.append((start, size))
            start += size
        chunk_bounds = tuple(chunk_bounds)

    kernel, n_sems = _make_hbm_copy_kernel(chunk_bounds)

    return pl.pallas_call(
        kernel,
        out_shape=jax.ShapeDtypeStruct(x.shape, x.dtype),
        in_specs=[pl.BlockSpec(memory_space=pl.ANY)],    # stay in HBM
        out_specs=pl.BlockSpec(memory_space=pl.ANY),     # allocated in HBM
        scratch_shapes=[pltpu.SemaphoreType.DMA((n_sems,))],
        compiler_params=pltpu.CompilerParams(has_side_effects=True),
    )(x)


class NoVQBottleneckPallas:
    """JAX/Pallas port of vqt2g.vq_layer.NoVQBottleneck."""

    def __init__(self, codebook_size: int = 0, embedding_dim: int = 0,
                 commitment_cost: float = 0.0):
        self.embedding_dim = embedding_dim
        self.codebook_size = 1
        self.commitment_cost = 0
        # nn.Embedding(1, embedding_dim) — kept for parity, unused in forward.
        key = jax.random.PRNGKey(42)
        self.embedding_weight = jax.random.normal(
            key, (self.codebook_size, max(self.embedding_dim, 1)), jnp.float32)

    def forward(self, inputs, only_return_ids: bool = False,
                copy_through_kernel: bool = False, force_kernel: bool = False):
        if only_return_ids:
            raise ValueError(
                "Can't return codebook ids as NoVQBottleneck doesn't have a codebook")

        # TODO(synk): torch.tensor(0) is int64; JAX defaults to int32 without
        # x64 — values match, dtype differs.
        vq_loss = jnp.array(0, dtype=jnp.int32)
        perplexity = jnp.array(0, dtype=jnp.int32)
        encodings = 0

        if copy_through_kernel:
            # Optional: materialize a distinct buffer via the DMA copy kernel.
            quantized = pallas_identity_copy(inputs, force_kernel=force_kernel)
        else:
            # Hot path: identity pass-through — zero HBM traffic, no kernel.
            quantized = inputs

        return (vq_loss, quantized, perplexity, encodings)


if __name__ == "__main__":
    # Small NCHW input consistent with a VQ bottleneck's encoder output.
    B, C, H, W = 2, 4, 16, 16
    key = jax.random.PRNGKey(0)
    k1, k2 = jax.random.split(key)
    x = jax.random.normal(k1, (B, C, H, W), dtype=jnp.float32)

    module = NoVQBottleneckPallas(codebook_size=0, embedding_dim=C,
                                  commitment_cost=0.0)

    # Default (optimal) path: zero-copy pass-through.
    vq_loss, quantized, perplexity, encodings = module.forward(x)
    quantized = jax.block_until_ready(quantized)
    assert quantized.shape == (B, C, H, W)
    assert quantized.dtype == x.dtype
    assert bool(jnp.array_equal(quantized, x))
    assert int(vq_loss) == 0
    assert int(perplexity) == 0
    assert encodings == 0

    # Exercise the HBM->HBM DMA copy kernel on the small input (forced past
    # the small-input fast path): single-chunk case.
    _, quantized_copy, _, _ = module.forward(
        x, copy_through_kernel=True, force_kernel=True)
    quantized_copy = jax.block_until_ready(quantized_copy)
    assert quantized_copy.shape == (B, C, H, W)
    assert quantized_copy.dtype == x.dtype
    assert bool(jnp.array_equal(quantized_copy, x))

    # Multi-chunk (concurrent DMAs) case: 1 MiB f32 -> 2 chunk DMAs.
    y = jax.random.normal(k2, (32, 64, 128), dtype=jnp.float32)
    y_copy = jax.block_until_ready(pallas_identity_copy(y))
    assert y_copy.shape == y.shape
    assert y_copy.dtype == y.dtype
    assert bool(jnp.array_equal(y_copy, y))

    print("KERNEL_OK")
</pallas_src>

<mosaic_0001>
module attributes {stable_mosaic.version = 11 : i64} {
  func.func @kernel(%arg0: memref<2x4x16x16xf32, #tpu.memory_space<any>>, %arg1: memref<2x4x16x16xf32, #tpu.memory_space<any>>, %arg2: memref<1x!tpu.dma_semaphore, #tpu.memory_space<semaphore_mem>>) attributes {dimension_semantics = [], scalar_prefetch = 0 : i64, scratch_operands = 1 : i64, tpu.core_type = #tpu.core_type<tc>} {
    %c0_i32 = arith.constant 0 : i32
    %0 = tpu.memref_slice %arg2[%c0_i32] : memref<1x!tpu.dma_semaphore, #tpu.memory_space<semaphore_mem>> -> memref<1x!tpu.dma_semaphore, #tpu.memory_space<semaphore_mem>>
    %1 = tpu.memref_squeeze %0 : memref<1x!tpu.dma_semaphore, #tpu.memory_space<semaphore_mem>> -> memref<!tpu.dma_semaphore, #tpu.memory_space<semaphore_mem>>
    tpu.enqueue_dma source(%arg0 : memref<2x4x16x16xf32, #tpu.memory_space<any>>) target(%arg1 : memref<2x4x16x16xf32, #tpu.memory_space<any>>) target_semaphore(%1 : memref<!tpu.dma_semaphore, #tpu.memory_space<semaphore_mem>>)
    %c0_i32_0 = arith.constant 0 : i32
    %2 = tpu.memref_slice %arg2[%c0_i32_0] : memref<1x!tpu.dma_semaphore, #tpu.memory_space<semaphore_mem>> -> memref<1x!tpu.dma_semaphore, #tpu.memory_space<semaphore_mem>>
    %3 = tpu.memref_squeeze %2 : memref<1x!tpu.dma_semaphore, #tpu.memory_space<semaphore_mem>> -> memref<!tpu.dma_semaphore, #tpu.memory_space<semaphore_mem>>
    tpu.wait_dma2 semaphore(%3 : memref<!tpu.dma_semaphore, #tpu.memory_space<semaphore_mem>>) src(%arg0 : memref<2x4x16x16xf32, #tpu.memory_space<any>>) dst(%arg1 : memref<2x4x16x16xf32, #tpu.memory_space<any>>)
    return
  }
}

</mosaic_0001>

<llo_original>
// kernel: tpu_custom_call.1
$region0: #{tpu_custom_call.1}
  #allocation0 [shape = 'u32[]', space=smem, size = 0x4, offset = 0x4, fixed_abs, tag = 'smem constant byte address 0x4 - core index']
  #allocation1 [shape = 'u32[72,128]{1,0:T(1,128)}', space=vmem, size = 0x9000, scoped, tag = 'internal scratch']
  #allocation2 [shape = 's32[1]{0}', space=sflag, size = 0x4, scoped, tag = 'scratch operand']
  #allocation3 [shape = 's32[]', space=sflag, size = 0x4, offset = 0, fixed_abs, tag = 'sflag constant byte address 0x0 - dummy sync flag']
  #allocation4 [shape = 'u32[0]{0}', space=smem, size = 0, offset = 0, fixed_abs, tag = 'smem constant byte address 0x0 - null']
  %s0 = inlined_call_operand.hbm [shape: f32[2,4,16,16], index: 0, kind: input, shape index: {}]
  %s1 = inlined_call_operand.hbm [shape: f32[2,4,16,16], index: 1, kind: output, shape index: {}]
  %s2 = sld [smem:[#allocation0]]
  $region2: #{tpu_custom_call.1} parent=0
    _
  %s4 = ssub.s32 1, %s2
  %s5 = scalar_select 0, %s4, %s2
  %s7 = sshll.u32 1, 14
  %s8 = sxor.u32 4294967295, %s7
  %s10 = sshll.u32 %s0, 4
  %s11 = int_to_ptr.hbm [resolvable:$true] %s10
  %s12 = sshll.u32 %s1, 4
  %s13 = int_to_ptr.hbm [resolvable:$true] %s12
  %16 = dma.general %s11, 2048, %s13, [#allocation2], [#allocation3], [#allocation4], 0, 0
  %s17 = smul.u32 2, 4
  %s18 = smul.u32 %s17, 16
  %s19 = smul.u32 %s18, 1
  %s20 = sshll.u32 %s19, 4
  %21 = dma.done [#allocation2], %s20
  %22 = vsyncmov [#allocation2]
  %s23 = vpop.sfrf %22
  %p24 = scmp.eq.s32.totalorder %s23, 0
  %p25 = pneg %p24
  %27 = shalt.err (%p25)

</llo_original>
